<compile_context>
chip_gen: v6e
topology: v6e:2x2x1
jax: 0.10.0
libtpu: 0.0.40
codegen_flags: <defaults>
</compile_context>

<pallas_src>
import functools
import math

import jax
import jax.numpy as jnp
from jax.experimental import pallas as pl
from jax.experimental.pallas import tpu as pltpu


def _round_up(x, m):
    return ((x + m - 1) // m) * m


def _num_tensorcores():
    """Best-effort TensorCore count (v7x: 2 per chip, v5e/v6e: 1). Defensive."""
    try:
        info = pltpu.get_tpu_info()
        for attr in ("num_cores", "core_count", "num_tensorcores", "tensorcore_count"):
            n = getattr(info, attr, None)
            if isinstance(n, int) and n > 0:
                return n
    except Exception:
        pass
    try:
        n = getattr(jax.devices()[0], "num_cores", None)
        if isinstance(n, int) and n > 0:
            return n
    except Exception:
        pass
    return 1


def adapter_kernel(*refs, scale, has_residual):
    """One token tile: down-proj -> bias -> ReLU -> up-proj -> bias -> scale
    (-> optional fused residual add)."""
    if has_residual:
        x_ref, res_ref, wd_ref, bd_ref, wu_ref, bu_ref, o_ref = refs
    else:
        x_ref, wd_ref, bd_ref, wu_ref, bu_ref, o_ref = refs
        res_ref = None

    # Down-projection: inputs stay in their native dtype (bf16 runs at native
    # MXU rate, f32 also works); accumulate in f32.
    down = jnp.dot(x_ref[...], wd_ref[...], preferred_element_type=jnp.float32)
    down = jnp.maximum(down + bd_ref[...].astype(jnp.float32), 0.0)
    # TODO(synk): training-mode dropout (p=0.1) would use pltpu.prng_seed /
    #             pltpu.prng_random_bits; eval mode is identity, so omitted.

    # Up-projection: keep the post-ReLU intermediate in f32 (explicit choice —
    # the kernel is HBM-bound, so the f32 MXU pass is free and more accurate
    # than rounding the intermediate to bf16 first).
    up = jnp.dot(down, wu_ref[...].astype(jnp.float32),
                 preferred_element_type=jnp.float32)
    up = (up + bu_ref[...].astype(jnp.float32)) * scale

    if has_residual:
        up = up + res_ref[...].astype(jnp.float32)

    # Epilogue stays fused on the output write — free VPU filler under the
    # DMA/MXU-bound regime; do not pre-scale in the wrapper.
    o_ref[...] = up.astype(o_ref.dtype)


def adapter_forward(x, w_down, b_down, w_up, b_up, *, scale=0.1, residual=None,
                    tile_n=1024, vmem_budget_bytes=40 * 1024 * 1024):
    """x: [B, S, D]; w_down: [D, K]; b_down: [1, K]; w_up: [K, D]; b_up: [1, D].

    If `residual` ([B, S, D]) is given, returns residual + adapter(x) fused in
    one kernel (one fewer full HBM pass each way).  Production path: pass bf16
    x / weights — f32 accumulation happens inside the kernel either way.
    """
    B, S, D = x.shape
    K = w_down.shape[1]
    N = B * S
    has_residual = residual is not None

    # Sublane granularity for the token axis: 8 rows for f32, 16 for bf16.
    sub = 16 if x.dtype == jnp.bfloat16 else 8

    # Pad the bottleneck K up to exactly one 128-lane group so the
    # intermediate and the up-proj contraction are lane-dense.  Zero padding
    # is exact: x @ 0 + 0 = 0, relu(0) = 0, padded rows of w_up are 0.
    # Do NOT pad to 256: the kernel is far below the MXU ridge on every
    # generation, extra FLOPs buy nothing.
    Kp = _round_up(K, 128)
    if Kp != K:
        w_down = jnp.pad(w_down, ((0, 0), (0, Kp - K)))
        b_down = jnp.pad(b_down, ((0, 0), (0, Kp - K)))
        w_up = jnp.pad(w_up, ((0, Kp - K), (0, 0)))

    # Token tile: as large as requested, sublane-aligned, never bigger than
    # the (sublane-rounded) token count.  No full-array padding: the grid is
    # cdiv(N, tile) and Pallas masks the ragged last block's output writes.
    tile = min(tile_n, _round_up(N, sub))

    # Only force a >=2-step grid when the chip actually has >1 TensorCore
    # (v7x).  On v5e/v6e an extra grid step is ~0.35 us of pure overhead.
    if _num_tensorcores() >= 2 and pl.cdiv(N, tile) < 2 and N > sub:
        tile = _round_up(pl.cdiv(N, 2), sub)

    # VMEM budget (v7x has only 64 MiB per TC): shrink the tile until the
    # per-step footprint fits, then pass an explicit vmem_limit_bytes.
    in_bytes = jnp.dtype(x.dtype).itemsize
    w_bytes = jnp.dtype(w_down.dtype).itemsize

    def vmem_estimate(t):
        xbuf = 2 * t * D * in_bytes                              # double-buffered x tile
        obuf = 2 * t * D * in_bytes                              # double-buffered out tile
        rbuf = 2 * t * D * in_bytes if has_residual else 0       # residual tile
        wbuf = 2 * ((D * Kp) + (Kp * D) + Kp + D) * w_bytes      # resident weights/biases
        inter = t * Kp * 4                                       # f32 bottleneck intermediate
        return xbuf + obuf + rbuf + wbuf + inter

    while vmem_estimate(tile) > vmem_budget_bytes and tile > sub:
        tile = max(_round_up(tile // 2, sub), sub)

    est = vmem_estimate(tile)
    vmem_limit = int(min(max(est * 3 // 2 + (2 << 20), 32 << 20), 60 << 20))

    xf = x.reshape(N, D)
    grid = (pl.cdiv(N, tile),)

    tok_spec = lambda: pl.BlockSpec((tile, D), lambda i: (i, 0))
    in_specs = [tok_spec()]                                      # x tile (token-parallel)
    inputs = [xf]
    if has_residual:
        in_specs.append(tok_spec())                              # residual tile
        inputs.append(residual.reshape(N, D))
    in_specs += [
        pl.BlockSpec((D, Kp), lambda i: (0, 0)),                 # down weight (resident)
        pl.BlockSpec((1, Kp), lambda i: (0, 0)),                 # down bias  (resident)
        pl.BlockSpec((Kp, D), lambda i: (0, 0)),                 # up weight  (resident)
        pl.BlockSpec((1, D), lambda i: (0, 0)),                  # up bias    (resident)
    ]
    inputs += [w_down, b_down, w_up, b_up]

    # Advisory cost estimate: memory-bound custom call inside a larger block.
    flops = 4 * N * D * Kp
    bytes_accessed = (N * D * in_bytes) * (2 + (1 if has_residual else 0)) \
        + ((D * Kp) + (Kp * D) + Kp + D) * w_bytes

    out = pl.pallas_call(
        functools.partial(adapter_kernel, scale=scale, has_residual=has_residual),
        out_shape=jax.ShapeDtypeStruct((N, D), x.dtype),
        grid_spec=pltpu.PrefetchScalarGridSpec(
            num_scalar_prefetch=0,
            grid=grid,
            in_specs=in_specs,
            out_specs=pl.BlockSpec((tile, D), lambda i: (i, 0)),
        ),
        compiler_params=pltpu.CompilerParams(
            dimension_semantics=("parallel",),
            vmem_limit_bytes=vmem_limit,
        ),
        cost_estimate=pl.CostEstimate(
            flops=flops, transcendentals=0, bytes_accessed=bytes_accessed),
    )(*inputs)

    return out.reshape(B, S, D)


def adapter_reference(x, w_down, b_down, w_up, b_up, scale=0.1):
    x32 = x.astype(jnp.float32)
    down = jnp.maximum(
        jnp.einsum("bsd,dk->bsk", x32, w_down.astype(jnp.float32))
        + b_down[0].astype(jnp.float32), 0.0)
    up = jnp.einsum("bsk,kd->bsd", down, w_up.astype(jnp.float32)) \
        + b_up[0].astype(jnp.float32)
    return up * scale


if __name__ == "__main__":
    # Small shapes consistent with the module (n_embd -> bottleneck -> n_embd).
    batch, seq, n_embd, bottleneck = 2, 8, 128, 32
    scale = 0.1  # scalar='0.1'

    key = jax.random.PRNGKey(0)
    kx, kd, ku = jax.random.split(key, 3)

    x = jax.random.normal(kx, (batch, seq, n_embd), dtype=jnp.float32)

    # Module __init__ parameter init, reproduced deterministically:
    #   down_proj.weight: kaiming_uniform_(a=sqrt(5)) -> U(-1/sqrt(fan_in), 1/sqrt(fan_in))
    #   up_proj.weight:   zeros (init_option='lora');  both biases: zeros
    bound = 1.0 / math.sqrt(n_embd)
    w_down = jax.random.uniform(
        kd, (n_embd, bottleneck), minval=-bound, maxval=bound, dtype=jnp.float32
    )
    b_down = jnp.zeros((1, bottleneck), dtype=jnp.float32)
    w_up = jnp.zeros((bottleneck, n_embd), dtype=jnp.float32)
    b_up = jnp.zeros((1, n_embd), dtype=jnp.float32)

    # 1) Module-faithful parameters (up_proj zero-init => zero output).
    out = jax.block_until_ready(adapter_forward(x, w_down, b_down, w_up, b_up, scale=scale))
    ref = adapter_reference(x, w_down, b_down, w_up, b_up, scale=scale)
    assert jnp.allclose(out, ref, atol=1e-5, rtol=1e-5)

    # 2) Non-zero up_proj weights (exercises the full compute path), f32.
    w_up_nz = jax.random.uniform(
        ku, (bottleneck, n_embd), minval=-0.05, maxval=0.05, dtype=jnp.float32
    )
    b_up_nz = jnp.full((1, n_embd), 0.01, dtype=jnp.float32)
    out2 = jax.block_until_ready(
        adapter_forward(x, w_down, b_down, w_up_nz, b_up_nz, scale=scale)
    )
    ref2 = adapter_reference(x, w_down, b_down, w_up_nz, b_up_nz, scale=scale)
    assert jnp.allclose(out2, ref2, atol=1e-5, rtol=1e-5)

    # 3) Ragged token count (exercises the masked last block — no jnp.pad), f32.
    x_ragged = x[:, :7, :]  # N = 14, not a multiple of the sublane count
    out3 = jax.block_until_ready(
        adapter_forward(x_ragged, w_down, b_down, w_up_nz, b_up_nz, scale=scale)
    )
    ref3 = adapter_reference(x_ragged, w_down, b_down, w_up_nz, b_up_nz, scale=scale)
    assert jnp.allclose(out3, ref3, atol=1e-5, rtol=1e-5)

    # 4) bf16 inputs/weights (halves HBM traffic — the intended production
    #    path), f32 accumulation + f32 intermediate inside the kernel; looser
    #    tolerance only for bf16 rounding of the inputs.
    to_bf16 = lambda a: a.astype(jnp.bfloat16)
    out4 = jax.block_until_ready(
        adapter_forward(to_bf16(x), to_bf16(w_down), to_bf16(b_down),
                        to_bf16(w_up_nz), to_bf16(b_up_nz), scale=scale)
    )
    ref4 = adapter_reference(to_bf16(x), to_bf16(w_down), to_bf16(b_down),
                             to_bf16(w_up_nz), to_bf16(b_up_nz), scale=scale)
    assert jnp.allclose(out4.astype(jnp.float32), ref4, atol=2e-2, rtol=2e-2)

    # 5) Fused residual add (how adapters are actually used: x + adapter(x)).
    out5 = jax.block_until_ready(
        adapter_forward(x, w_down, b_down, w_up_nz, b_up_nz, scale=scale, residual=x)
    )
    ref5 = x + adapter_reference(x, w_down, b_down, w_up_nz, b_up_nz, scale=scale)
    assert jnp.allclose(out5, ref5, atol=1e-5, rtol=1e-5)

    print("KERNEL_OK")
</pallas_src>

<mosaic_0001>
module attributes {stable_mosaic.version = 11 : i64} {
  func.func @adapter_kernel(%arg0: i32, %arg1: memref<16x128xf32, #tpu.memory_space<vmem>>, %arg2: memref<128x128xf32, #tpu.memory_space<vmem>>, %arg3: memref<1x128xf32, #tpu.memory_space<vmem>>, %arg4: memref<128x128xf32, #tpu.memory_space<vmem>>, %arg5: memref<1x128xf32, #tpu.memory_space<vmem>>, %arg6: memref<16x128xf32, #tpu.memory_space<vmem>>) attributes {dimension_semantics = [#tpu.dimension_semantics<parallel>], iteration_bounds = array<i64: 1>, scalar_prefetch = 0 : i64, scratch_operands = 0 : i64, tpu.core_type = #tpu.core_type<tc>, window_params = [{transform_indices = @transform_0, window_bounds = array<i64: 16, 128>}, {pipeline_mode = #tpu.pipeline_mode<synchronous>, transform_indices = @transform_1, window_bounds = array<i64: 128, 128>}, {pipeline_mode = #tpu.pipeline_mode<synchronous>, transform_indices = @transform_2, window_bounds = array<i64: 1, 128>}, {pipeline_mode = #tpu.pipeline_mode<synchronous>, transform_indices = @transform_3, window_bounds = array<i64: 128, 128>}, {pipeline_mode = #tpu.pipeline_mode<synchronous>, transform_indices = @transform_4, window_bounds = array<i64: 1, 128>}, {transform_indices = @transform_5, window_bounds = array<i64: 16, 128>}]} {
    %c0 = arith.constant 0 : index
    %c0_0 = arith.constant 0 : index
    %0 = vector.load %arg1[%c0, %c0_0] : memref<16x128xf32, #tpu.memory_space<vmem>>, vector<16x128xf32>
    %c0_1 = arith.constant 0 : index
    %c0_2 = arith.constant 0 : index
    %1 = vector.load %arg2[%c0_1, %c0_2] : memref<128x128xf32, #tpu.memory_space<vmem>>, vector<128x128xf32>
    %cst = arith.constant dense<0.000000e+00> : vector<16x128xf32>
    %2 = tpu.matmul %0, %1, %cst {dimension_numbers = #tpu.dot_dimension_numbers<[1], [0], [0], [1], [0, 0, 1, 1], [], []>} : vector<16x128xf32>, vector<128x128xf32>, vector<16x128xf32> -> vector<16x128xf32>
    %c0_3 = arith.constant 0 : index
    %c0_4 = arith.constant 0 : index
    %3 = vector.load %arg3[%c0_3, %c0_4] : memref<1x128xf32, #tpu.memory_space<vmem>>, vector<1x128xf32>
    %4 = vector.broadcast %3 : vector<1x128xf32> to vector<16x128xf32>
    %5 = arith.addf %2, %4 : vector<16x128xf32>
    %cst_5 = arith.constant 0.000000e+00 : f32
    %6 = vector.broadcast %cst_5 : f32 to vector<16x128xf32>
    %7 = arith.maximumf %5, %6 : vector<16x128xf32>
    %c0_6 = arith.constant 0 : index
    %c0_7 = arith.constant 0 : index
    %8 = vector.load %arg4[%c0_6, %c0_7] : memref<128x128xf32, #tpu.memory_space<vmem>>, vector<128x128xf32>
    %cst_8 = arith.constant dense<0.000000e+00> : vector<16x128xf32>
    %9 = tpu.matmul %7, %8, %cst_8 {dimension_numbers = #tpu.dot_dimension_numbers<[1], [0], [0], [1], [0, 0, 1, 1], [], []>} : vector<16x128xf32>, vector<128x128xf32>, vector<16x128xf32> -> vector<16x128xf32>
    %c0_9 = arith.constant 0 : index
    %c0_10 = arith.constant 0 : index
    %10 = vector.load %arg5[%c0_9, %c0_10] : memref<1x128xf32, #tpu.memory_space<vmem>>, vector<1x128xf32>
    %11 = vector.broadcast %10 : vector<1x128xf32> to vector<16x128xf32>
    %12 = arith.addf %9, %11 : vector<16x128xf32>
    %cst_11 = arith.constant 1.000000e-01 : f32
    %13 = vector.broadcast %cst_11 : f32 to vector<16x128xf32>
    %14 = arith.mulf %12, %13 : vector<16x128xf32>
    %c0_12 = arith.constant 0 : index
    %c0_13 = arith.constant 0 : index
    %15 = vector.load %arg6[%c0_12, %c0_13] : memref<16x128xf32, #tpu.memory_space<vmem>>, vector<16x128xf32>
    tpu.vector_store %arg6[%c0_12, %c0_13], %14 {strides = array<i32>} : memref<16x128xf32, #tpu.memory_space<vmem>>, vector<16x128xf32>,
    return
  }
  func.func @transform_0(%arg0: i32) -> (i32, i32) {
    %c0_i32 = arith.constant 0 : i32
    %c0_i32_0 = arith.constant 0 : i32
    return %arg0, %c0_i32 : i32, i32
  }
  func.func @transform_1(%arg0: i32) -> (i32, i32) {
    %c0_i32 = arith.constant 0 : i32
    %c0_i32_0 = arith.constant 0 : i32
    %c0_i32_1 = arith.constant 0 : i32
    return %c0_i32, %c0_i32_0 : i32, i32
  }
  func.func @transform_2(%arg0: i32) -> (i32, i32) {
    %c0_i32 = arith.constant 0 : i32
    %c0_i32_0 = arith.constant 0 : i32
    %c0_i32_1 = arith.constant 0 : i32
    return %c0_i32, %c0_i32_0 : i32, i32
  }
  func.func @transform_3(%arg0: i32) -> (i32, i32) {
    %c0_i32 = arith.constant 0 : i32
    %c0_i32_0 = arith.constant 0 : i32
    %c0_i32_1 = arith.constant 0 : i32
    return %c0_i32, %c0_i32_0 : i32, i32
  }
  func.func @transform_4(%arg0: i32) -> (i32, i32) {
    %c0_i32 = arith.constant 0 : i32
    %c0_i32_0 = arith.constant 0 : i32
    %c0_i32_1 = arith.constant 0 : i32
    return %c0_i32, %c0_i32_0 : i32, i32
  }
  func.func @transform_5(%arg0: i32) -> (i32, i32) {
    %c0_i32 = arith.constant 0 : i32
    %c0_i32_0 = arith.constant 0 : i32
    return %arg0, %c0_i32 : i32, i32
  }
}

</mosaic_0001>

<llo_original>
// kernel: tpu_custom_call.1
$region0: #{tpu_custom_call.1}
  #allocation0 [shape = 'u32[]', space=smem, size = 0x4, offset = 0x4, fixed_abs, tag = 'smem constant byte address 0x4 - core index']
  #allocation1 [shape = 'u32[144,128]{1,0:T(1,128)}', space=vmem, size = 0x12000, scoped, tag = 'internal scratch']
  %s0 = inlined_call_operand.hbm [shape: f32[16,128], index: 0, kind: input, shape index: {}]
  %s1 = inlined_call_operand.hbm [shape: f32[128,128], index: 1, kind: input, shape index: {}]
  %s2 = inlined_call_operand.vmem [shape: f32[1,128], index: 2, kind: input, shape index: {}]
  %s3 = inlined_call_operand.hbm [shape: f32[128,128], index: 3, kind: input, shape index: {}]
  %s4 = inlined_call_operand.vmem [shape: f32[1,128], index: 4, kind: input, shape index: {}]
  %s5 = inlined_call_operand.hbm [shape: f32[16,128], index: 5, kind: output, shape index: {}]
  %s6 = sld [smem:[#allocation0]]
  $region42: #{tpu_custom_call.1} parent=0
    _
  %s8 = ssub.s32 1, %s6
  %s9 = scalar_select 0, %s8, %s6
  $region1: #{tpu_custom_call.1} parent=0
    #allocation2 [shape = 'u8[8192]{0}', space=vmem, size = 0x2000, scoped, tag = 'input window, operand 0, single buffered']
    #allocation3 [shape = 's32[1]{0}', space=sflag, size = 0x4, scoped, tag = 'scoped memory for tpu_custom_call.1']
    #allocation4 [shape = 's32[1]{0}', space=sflag, size = 0x4, scoped, tag = 'scoped memory for tpu_custom_call.1']
    #allocation5 [shape = 'u8[65536]{0}', space=vmem, size = 0x10000, scoped, tag = 'input window, operand 1, single buffered']
    #allocation6 [shape = 's32[1]{0}', space=sflag, size = 0x4, scoped, tag = 'scoped memory for tpu_custom_call.1']
    #allocation7 [shape = 'u8[65536]{0}', space=vmem, size = 0x10000, scoped, tag = 'input window, operand 3, single buffered']
    #allocation8 [shape = 'u8[8192]{0}', space=vmem, size = 0x2000, scoped, tag = 'output window, operand 0, single buffered']
    %10 = vsyncpa [#allocation3], 0
    %11 = vsyncpa [#allocation6], 0
    %12 = vsyncpa [#allocation4], 0
    // Predicated region
    $region2: #{tpu_custom_call.1} parent=1 // pred_check
      _
    $region3: #{tpu_custom_call.1} parent=1 // pred_check_branch
      %14 = sbr.rel (0) target = $region5
    $region4: #{tpu_custom_call.1} parent=1 // pred_region
      %s16 = ssub.s32 256, 256
      %17 = vsyncadd [#allocation3], %s16
      %s18 = sshll.u32 [#allocation2], 4
      %s19 = int_to_ptr.vmem [resolvable:$true] %s18
      %24 = dma.hbm_to_vmem [thread:$0]  %s0, 256, %s19, [#allocation3], 128, 128, 8
    $region5: #{tpu_custom_call.1} parent=1 // pred_fallthru
      _
    // Predicated region
    $region6: #{tpu_custom_call.1} parent=1 // pred_check
      _
    $region7: #{tpu_custom_call.1} parent=1 // pred_check_branch
      %26 = sbr.rel (0) target = $region9
    $region8: #{tpu_custom_call.1} parent=1 // pred_region
      %s28 = ssub.s32 2048, 2048
      %29 = vsyncadd [#allocation6], %s28
      %s30 = sshll.u32 [#allocation5], 4
      %s31 = int_to_ptr.vmem [resolvable:$true] %s30
      %36 = dma.hbm_to_vmem [thread:$0]  %s1, 2048, %s31, [#allocation6], 128, 128, 8
    $region9: #{tpu_custom_call.1} parent=1 // pred_fallthru
      _
    // Predicated region
    $region10: #{tpu_custom_call.1} parent=1 // pred_check
      _
    $region11: #{tpu_custom_call.1} parent=1 // pred_check_branch
      %38 = sbr.rel (0) target = $region13
    $region12: #{tpu_custom_call.1} parent=1 // pred_region
      _
    $region13: #{tpu_custom_call.1} parent=1 // pred_fallthru
      _
    // Predicated region
    $region14: #{tpu_custom_call.1} parent=1 // pred_check
      _
    $region15: #{tpu_custom_call.1} parent=1 // pred_check_branch
      %40 = sbr.rel (0) target = $region17
    $region16: #{tpu_custom_call.1} parent=1 // pred_region
      %s42 = ssub.s32 2048, 2048
      %43 = vsyncadd [#allocation6], %s42
      %s44 = sshll.u32 [#allocation7], 4
      %s45 = int_to_ptr.vmem [resolvable:$true] %s44
      %50 = dma.hbm_to_vmem [thread:$0]  %s3, 2048, %s45, [#allocation6], 128, 128, 8
    $region17: #{tpu_custom_call.1} parent=1 // pred_fallthru
      _
    // Predicated region
    $region18: #{tpu_custom_call.1} parent=1 // pred_check
      _
    $region19: #{tpu_custom_call.1} parent=1 // pred_check_branch
      %52 = sbr.rel (0) target = $region21
    $region20: #{tpu_custom_call.1} parent=1 // pred_region
      _
    $region21: #{tpu_custom_call.1} parent=1 // pred_fallthru
      _
    // Predicated region
    $region22: #{tpu_custom_call.1} parent=1 // pred_check
      _
    $region23: #{tpu_custom_call.1} parent=1 // pred_check_branch
      %54 = sbr.rel (0) target = $region25
    $region24: #{tpu_custom_call.1} parent=1 // pred_region
      %55 = dma.done [#allocation3], 256
    $region25: #{tpu_custom_call.1} parent=1 // pred_fallthru
      _
    // Predicated region
    $region26: #{tpu_custom_call.1} parent=1 // pred_check
      _
    $region27: #{tpu_custom_call.1} parent=1 // pred_check_branch
      %57 = sbr.rel (0) target = $region29
    $region28: #{tpu_custom_call.1} parent=1 // pred_region
      %58 = dma.done [#allocation6], 2048
    $region29: #{tpu_custom_call.1} parent=1 // pred_fallthru
      _
    // Predicated region
    $region30: #{tpu_custom_call.1} parent=1 // pred_check
      _
    $region31: #{tpu_custom_call.1} parent=1 // pred_check_branch
      %60 = sbr.rel (0) target = $region33
    $region32: #{tpu_custom_call.1} parent=1 // pred_region
      %61 = dma.done [#allocation6], 2048
    $region33: #{tpu_custom_call.1} parent=1 // pred_fallthru
      _
    %v62 = vld [vmem:[#allocation2] sm:$0xff]
    %v63 = vld [vmem:[#allocation2 + $0x8] sm:$0xff]
    %v64 = vld [vmem:[#allocation5] sm:$0xff]
    %v65 = vld [vmem:[#allocation5 + $0x8] sm:$0xff]
    %v66 = vld [vmem:[#allocation5 + $0x10] sm:$0xff]
    %v67 = vld [vmem:[#allocation5 + $0x18] sm:$0xff]
    %v68 = vld [vmem:[#allocation5 + $0x20] sm:$0xff]
    %v69 = vld [vmem:[#allocation5 + $0x28] sm:$0xff]
    %v70 = vld [vmem:[#allocation5 + $0x30] sm:$0xff]
    %v71 = vld [vmem:[#allocation5 + $0x38] sm:$0xff]
    %v72 = vld [vmem:[#allocation5 + $0x40] sm:$0xff]
    %v73 = vld [vmem:[#allocation5 + $0x48] sm:$0xff]
    %v74 = vld [vmem:[#allocation5 + $0x50] sm:$0xff]
    %v75 = vld [vmem:[#allocation5 + $0x58] sm:$0xff]
    %v76 = vld [vmem:[#allocation5 + $0x60] sm:$0xff]
    %v77 = vld [vmem:[#allocation5 + $0x68] sm:$0xff]
    %v78 = vld [vmem:[#allocation5 + $0x70] sm:$0xff]
    %v79 = vld [vmem:[#allocation5 + $0x78] sm:$0xff]
    %v80 = vld [vmem:[%s2] sm:$0x1]
    %v82 = vlaneseq
    %v83 = vshrl.u32 %v82, 7
    %v84 = vsub.s32 0, %v83
    %v85 = vrot.slane %v80, %v84
    %87 = vmatprep.subr.mxu0 0.0
    %88 = vmatpush1.msra.mxu0 %v79
    %89 = vmatprep.subr.mxu0 0.0
    %90 = vmatpush1.msra.mxu0 %v78
    %91 = vmatprep.subr.mxu0 0.0
    %92 = vmatpush1.msra.mxu0 %v77
    %93 = vmatprep.subr.mxu0 0.0
    %94 = vmatpush1.msra.mxu0 %v76
    %95 = vmatprep.subr.mxu0 0.0
    %96 = vmatpush1.msra.mxu0 %v75
    %97 = vmatprep.subr.mxu0 0.0
    %98 = vmatpush1.msra.mxu0 %v74
    %99 = vmatprep.subr.mxu0 0.0
    %100 = vmatpush1.msra.mxu0 %v73
    %101 = vmatprep.subr.mxu0 0.0
    %102 = vmatpush1.msra.mxu0 %v72
    %103 = vmatprep.subr.mxu0 0.0
    %104 = vmatpush1.msra.mxu0 %v71
    %105 = vmatprep.subr.mxu0 0.0
    %106 = vmatpush1.msra.mxu0 %v70
    %107 = vmatprep.subr.mxu0 0.0
    %108 = vmatpush1.msra.mxu0 %v69
    %109 = vmatprep.subr.mxu0 0.0
    %110 = vmatpush1.msra.mxu0 %v68
    %111 = vmatprep.subr.mxu0 0.0
    %112 = vmatpush1.msra.mxu0 %v67
    %113 = vmatprep.subr.mxu0 0.0
    %114 = vmatpush1.msra.mxu0 %v66
    %115 = vmatprep.subr.mxu0 0.0
    %116 = vmatpush1.msra.mxu0 %v65
    %117 = vmatprep.subr.mxu0 0.0
    %118 = vmatpush1.msra.mxu0 %v64
    %119 = vmatprep.subr.mxu0 0.0
    %120 = vmatpush2.msra.mxu0 0.0
    %121 = vmatprep.subr.mxu0 0.0
    %122 = vmatpush2.msra.mxu0 0.0
    %123 = vmatprep.subr.mxu0 0.0
    %124 = vmatpush2.msra.mxu0 0.0
    %125 = vmatprep.subr.mxu0 0.0
    %126 = vmatpush2.msra.mxu0 0.0
    %127 = vmatprep.subr.mxu0 0.0
    %128 = vmatpush2.msra.mxu0 0.0
    %129 = vmatprep.subr.mxu0 0.0
    %130 = vmatpush2.msra.mxu0 0.0
    %131 = vmatprep.subr.mxu0 0.0
    %132 = vmatpush2.msra.mxu0 0.0
    %133 = vmatprep.subr.mxu0 0.0
    %134 = vmatpush2.msra.mxu0 0.0
    %135 = vmatprep.subr.mxu0 0.0
    %136 = vmatpush2.msra.mxu0 0.0
    %137 = vmatprep.subr.mxu0 0.0
    %138 = vmatpush2.msra.mxu0 0.0
    %139 = vmatprep.subr.mxu0 0.0
    %140 = vmatpush2.msra.mxu0 0.0
    %141 = vmatprep.subr.mxu0 0.0
    %142 = vmatpush2.msra.mxu0 0.0
    %143 = vmatprep.subr.mxu0 0.0
    %144 = vmatpush2.msra.mxu0 0.0
    %145 = vmatprep.subr.mxu0 0.0
    %146 = vmatpush2.msra.mxu0 0.0
    %147 = vmatprep.subr.mxu0 0.0
    %148 = vmatpush2.msra.mxu0 0.0
    %149 = vmatprep.subr.mxu0 0.0
    %150 = vmatpush2.msra.mxu0 0.0
    %151 = vmatprep.mubr.f32.mxu0 0.0
    %152 = vmatmul.mubr.f32.gmra.mxu0 %v62
    %v153 = vpop.f32.mrf.mxu0
    %v154 = vadd.f32 %v85, %v153
    %v155 = vpop.f32.mrf.mxu0
    %156 = vmatprep.mubr.f32.mxu0 0.0
    %157 = vmatmul.mubr.f32.gmra.mxu0 %v63
    %v158 = vpop.f32.mrf.mxu0
    %v159 = vadd.f32 %v85, %v158
    %v160 = vpop.f32.mrf.mxu0
    %161 = vdwg.mxu0
    %v162 = vmax.f32 %v154, 0.0
    %v163 = vmax.f32 %v159, 0.0
    %v164 = vld [vmem:[#allocation7] sm:$0xff]
    %v165 = vld [vmem:[#allocation7 + $0x8] sm:$0xff]
    %v166 = vld [vmem:[#allocation7 + $0x10] sm:$0xff]
    %v167 = vld [vmem:[#allocation7 + $0x18] sm:$0xff]
    %v168 = vld [vmem:[#allocation7 + $0x20] sm:$0xff]
    %v169 = vld [vmem:[#allocation7 + $0x28] sm:$0xff]
    %v170 = vld [vmem:[#allocation7 + $0x30] sm:$0xff]
    %v171 = vld [vmem:[#allocation7 + $0x38] sm:$0xff]
    %v172 = vld [vmem:[#allocation7 + $0x40] sm:$0xff]
    %v173 = vld [vmem:[#allocation7 + $0x48] sm:$0xff]
    %v174 = vld [vmem:[#allocation7 + $0x50] sm:$0xff]
    %v175 = vld [vmem:[#allocation7 + $0x58] sm:$0xff]
    %v176 = vld [vmem:[#allocation7 + $0x60] sm:$0xff]
    %v177 = vld [vmem:[#allocation7 + $0x68] sm:$0xff]
    %v178 = vld [vmem:[#allocation7 + $0x70] sm:$0xff]
    %v179 = vld [vmem:[#allocation7 + $0x78] sm:$0xff]
    %v180 = vld [vmem:[%s4] sm:$0x1]
    %v182 = vlaneseq
    %v183 = vshrl.u32 %v182, 7
    %v184 = vsub.s32 0, %v183
    %v185 = vrot.slane %v180, %v184
    %187 = vmatprep.subr.mxu0 0.0
    %188 = vmatpush1.msra.mxu0 %v179
    %189 = vmatprep.subr.mxu0 0.0
    %190 = vmatpush1.msra.mxu0 %v178
    %191 = vmatprep.subr.mxu0 0.0
    %192 = vmatpush1.msra.mxu0 %v177
    %193 = vmatprep.subr.mxu0 0.0
    %194 = vmatpush1.msra.mxu0 %v176
    %195 = vmatprep.subr.mxu0 0.0
    %196 = vmatpush1.msra.mxu0 %v175
    %197 = vmatprep.subr.mxu0 0.0
    %198 = vmatpush1.msra.mxu0 %v174
    %199 = vmatprep.subr.mxu0 0.0
    %200 = vmatpush1.msra.mxu0 %v173
    %201 = vmatprep.subr.mxu0 0.0
    %202 = vmatpush1.msra.mxu0 %v172
    %203 = vmatprep.subr.mxu0 0.0
    %204 = vmatpush1.msra.mxu0 %v171
    %205 = vmatprep.subr.mxu0 0.0
    %206 = vmatpush1.msra.mxu0 %v170
    %207 = vmatprep.subr.mxu0 0.0
    %208 = vmatpush1.msra.mxu0 %v169
    %209 = vmatprep.subr.mxu0 0.0
    %210 = vmatpush1.msra.mxu0 %v168
    %211 = vmatprep.subr.mxu0 0.0
    %212 = vmatpush1.msra.mxu0 %v167
    %213 = vmatprep.subr.mxu0 0.0
    %214 = vmatpush1.msra.mxu0 %v166
    %215 = vmatprep.subr.mxu0 0.0
    %216 = vmatpush1.msra.mxu0 %v165
    %217 = vmatprep.subr.mxu0 0.0
    %218 = vmatpush1.msra.mxu0 %v164
    %219 = vmatprep.subr.mxu0 0.0
    %220 = vmatpush2.msra.mxu0 0.0
    %221 = vmatprep.subr.mxu0 0.0
    %222 = vmatpush2.msra.mxu0 0.0
    %223 = vmatprep.subr.mxu0 0.0
    %224 = vmatpush2.msra.mxu0 0.0
    %225 = vmatprep.subr.mxu0 0.0
    %226 = vmatpush2.msra.mxu0 0.0
    %227 = vmatprep.subr.mxu0 0.0
    %228 = vmatpush2.msra.mxu0 0.0
    %229 = vmatprep.subr.mxu0 0.0
    %230 = vmatpush2.msra.mxu0 0.0
    %231 = vmatprep.subr.mxu0 0.0
    %232 = vmatpush2.msra.mxu0 0.0
    %233 = vmatprep.subr.mxu0 0.0
    %234 = vmatpush2.msra.mxu0 0.0
    %235 = vmatprep.subr.mxu0 0.0
    %236 = vmatpush2.msra.mxu0 0.0
    %237 = vmatprep.subr.mxu0 0.0
    %238 = vmatpush2.msra.mxu0 0.0
    %239 = vmatprep.subr.mxu0 0.0
    %240 = vmatpush2.msra.mxu0 0.0
    %241 = vmatprep.subr.mxu0 0.0
    %242 = vmatpush2.msra.mxu0 0.0
    %243 = vmatprep.subr.mxu0 0.0
    %244 = vmatpush2.msra.mxu0 0.0
    %245 = vmatprep.subr.mxu0 0.0
    %246 = vmatpush2.msra.mxu0 0.0
    %247 = vmatprep.subr.mxu0 0.0
    %248 = vmatpush2.msra.mxu0 0.0
    %249 = vmatprep.subr.mxu0 0.0
    %250 = vmatpush2.msra.mxu0 0.0
    %251 = vmatprep.mubr.f32.mxu0 0.0
    %252 = vmatmul.mubr.f32.gmra.mxu0 %v162
    %v253 = vpop.f32.mrf.mxu0
    %v254 = vadd.f32 %v185, %v253
    %v255 = vpop.f32.mrf.mxu0
    %256 = vmatprep.mubr.f32.mxu0 0.0
    %257 = vmatmul.mubr.f32.gmra.mxu0 %v163
    %v258 = vpop.f32.mrf.mxu0
    %v259 = vadd.f32 %v185, %v258
    %v260 = vpop.f32.mrf.mxu0
    %261 = vdwg.mxu0
    %v262 = vmul.f32 %v254, 0.1
    %v263 = vmul.f32 %v259, 0.1
    %264 = vst [vmem:[#allocation8] sm:$0xff] %v262
    %265 = vst [vmem:[#allocation8 + $0x8] sm:$0xff] %v263
    // Predicated region
    $region34: #{tpu_custom_call.1} parent=1 // pred_check
      _
    $region35: #{tpu_custom_call.1} parent=1 // pred_check_branch
      %267 = sbr.rel (0) target = $region37
    $region36: #{tpu_custom_call.1} parent=1 // pred_region
      %s269 = ssub.s32 256, 256
      %270 = vsyncadd [#allocation4], %s269
      %s271 = sshll.u32 [#allocation8], 4
      %s272 = int_to_ptr.vmem [resolvable:$true] %s271
      %277 = dma.vmem_to_hbm [thread:$0]  %s272, 256, %s5, [#allocation4], 128, 128, 8
    $region37: #{tpu_custom_call.1} parent=1 // pred_fallthru
      _
    // Predicated region
    $region38: #{tpu_custom_call.1} parent=1 // pred_check
      _
    $region39: #{tpu_custom_call.1} parent=1 // pred_check_branch
      %279 = sbr.rel (0) target = $region41
    $region40: #{tpu_custom_call.1} parent=1 // pred_region
      %280 = dma.done [#allocation4], 256
    $region41: #{tpu_custom_call.1} parent=1 // pred_fallthru
      _
    %281 = vsyncpa [#allocation3], 1
    %282 = vsyncpa [#allocation6], 1
    %283 = vsyncpa [#allocation4], 1

</llo_original>
